<compile_context>
chip_gen: v5e
topology: v5e:2x2
jax: 0.10.0
libtpu: 0.0.40
codegen_flags: <defaults>
</compile_context>

<pallas_src>
import jax
import jax.numpy as jnp
from jax.experimental import pallas as pl
from jax.experimental.pallas import tpu as pltpu


def _round_up(x, m):
    return ((x + m - 1) // m) * m


def _torch_squeeze(a, dim):
    # torch's .squeeze(dim): only removes the dim if it has size 1.
    if a.shape[dim] == 1:
        return jnp.squeeze(a, axis=dim)
    return a


def _conv1x1_bias_kernel(x_ref, w_ref, b_ref, o_ref):
    # x_ref: (C, ts)  stored dtype of x (cast here, not in the wrapper)
    # w_ref: (to, C)  compute dtype (bf16 by default)
    # b_ref: (to, 1)  f32
    # o_ref: (to, ts) output dtype
    x = x_ref[...]
    if x.dtype != w_ref.dtype:
        x = x.astype(w_ref.dtype)          # in-VMEM cast: avoids an extra HBM pass over X
    acc = jnp.dot(w_ref[...], x, preferred_element_type=jnp.float32)
    o_ref[...] = (acc + b_ref[...]).astype(o_ref.dtype)   # f32 epilogue (v5e-safe)


def _vmem_capacity_bytes():
    try:
        info = pltpu.get_tpu_info()
        for name in ("vmem_capacity_bytes", "vmem_size_bytes", "vmem_bytes"):
            v = getattr(info, name, None)
            if v:
                return int(v)
    except Exception:
        pass
    return 64 << 20  # conservative fallback: v7x per-TC VMEM


def _vmem_limit_bytes(c, ts, to, x_bytes, w_bytes, out_bytes):
    # Honest per-tile budget (weight/bias are grid-invariant in practice but we
    # still budget two buffers to stay safe if the pipeline allocates them).
    est = 2 * c * ts * x_bytes            # X tile, double-buffered
    est += 2 * to * c * w_bytes           # weight tile
    est += 2 * to * 128 * 4               # bias tile (lane-padded, f32)
    est += 2 * to * ts * out_bytes        # output tile, double-buffered
    est += 2 * to * ts * 4                # f32 accumulate / epilogue temporaries
    est = int(est * 1.25) + (4 << 20)     # compiler scratch headroom
    # v7x: 64 MiB/TC -> stay well under it.  v5e/v6e: 128 MiB physical.
    cap = (40 << 20) if _vmem_capacity_bytes() <= (64 << 20) else (96 << 20)
    return max(min(est, cap), 8 << 20)


def _pointwise_conv(x3, w_mat, bias_col, *, out_dtype):
    """x3: (N, C, S) stored dtype; w_mat: (O_pad, C) compute dtype;
    bias_col: (O_pad, 1) f32.  Returns (N, O_pad, S) in out_dtype."""
    n, c, s = x3.shape
    o_pad = w_mat.shape[0]

    # Lane tile over the fused T*H*W positions: full extent when small, else a
    # lane-dense multiple of 128 (>=512 already reaches ~85% of HBM roofline).
    ts = s if s <= 512 else 512
    s_tiles = pl.cdiv(s, ts)

    # Split the class axis only when N * S_tiles can't feed both v7x
    # TensorCores with >=2 pipelined steps each.  Weights are tiny, so the
    # extra weight re-reads in that regime are negligible.
    if n * s_tiles < 4 and o_pad >= 256 and o_pad % 128 == 0:
        to = 128
    else:
        to = o_pad
    o_tiles = o_pad // to

    x_bytes = x3.dtype.itemsize
    w_bytes = w_mat.dtype.itemsize
    out_bytes = jnp.dtype(out_dtype).itemsize

    cost = pl.CostEstimate(
        flops=2 * n * s * c * o_pad,
        transcendentals=0,
        bytes_accessed=(n * c * s * x_bytes + o_pad * c * w_bytes
                        + o_pad * 4 + n * o_pad * s * out_bytes),
    )

    return pl.pallas_call(
        _conv1x1_bias_kernel,
        out_shape=jax.ShapeDtypeStruct((n, o_pad, s), out_dtype),
        grid_spec=pltpu.PrefetchScalarGridSpec(
            num_scalar_prefetch=0,
            # Class-tile axis innermost: X block index is unchanged across it,
            # so X is only DMA'd once per (n, s-tile).
            grid=(n, s_tiles, o_tiles),
            in_specs=[
                pl.BlockSpec((None, c, ts), lambda ni, si, oi: (ni, 0, si)),
                pl.BlockSpec((to, c), lambda ni, si, oi: (oi, 0)),
                pl.BlockSpec((to, 1), lambda ni, si, oi: (oi, 0)),
            ],
            out_specs=pl.BlockSpec((None, to, ts), lambda ni, si, oi: (ni, oi, si)),
        ),
        compiler_params=pltpu.CompilerParams(
            dimension_semantics=("parallel", "parallel", "parallel"),
            vmem_limit_bytes=_vmem_limit_bytes(c, ts, to, x_bytes, w_bytes, out_bytes),
        ),
        cost_estimate=cost,
    )(x3, w_mat, bias_col)


def prepare_classifier_params(conv_weight, conv_bias, *,
                              compute_dtype=jnp.bfloat16, class_pad=8):
    """One-time parameter transform (hoist out of the per-step forward path).

    conv_weight: (num_classes, C_in, 1, 1, 1) torch Conv3d layout.
    conv_bias:   (num_classes,)
    Returns (w_mat (O_pad, C) compute_dtype, bias_col (O_pad, 1) f32, num_classes).
    Use class_pad=128 if you want the class axis splittable across v7x cores.
    """
    num_classes, c_in = int(conv_weight.shape[0]), int(conv_weight.shape[1])
    o_pad = _round_up(num_classes, class_pad)
    # (O, C, 1, 1, 1) -> (O, C): already the matmul LHS layout, no transpose.
    w = conv_weight.reshape(num_classes, c_in).astype(compute_dtype)
    b = conv_bias.astype(jnp.float32).reshape(num_classes, 1)
    if o_pad != num_classes:
        w = jnp.pad(w, ((0, o_pad - num_classes), (0, 0)))
        b = jnp.pad(b, ((0, o_pad - num_classes), (0, 0)))
    return w, b, num_classes


def classifier_i3d_apply(x, w_mat, bias_col, num_classes, *, out_dtype=None):
    """Forward pass with pre-transformed parameters (see prepare_classifier_params).

    x: (N, C_in, T, H, W).  Returns torch-equivalent logits:
    conv output with size-1 H/W dims squeezed, typically (N, num_classes, T).
    out_dtype defaults to the compute dtype (bf16): halves writeback HBM bytes.
    """
    n, c, t, h, w = x.shape
    if w_mat.shape[1] != c:
        raise ValueError(f"channel mismatch: x has {c}, weights expect {w_mat.shape[1]}")
    if out_dtype is None:
        out_dtype = w_mat.dtype
    s = t * h * w
    x3 = x.reshape(n, c, s)                     # trailing-dim merge only: no copy
    out3 = _pointwise_conv(x3, w_mat, bias_col, out_dtype=out_dtype)  # (N, O_pad, S)
    conv_out = out3[:, :num_classes, :].reshape(n, num_classes, t, h, w)
    # torch: x.squeeze(3).squeeze(3)
    return _torch_squeeze(_torch_squeeze(conv_out, 3), 3)


def classifier_i3d_forward(x, conv_weight, conv_bias, *,
                           compute_dtype=jnp.bfloat16, out_dtype=None, class_pad=8):
    """Convenience forward taking raw torch-layout parameters.
    For repeated calls, hoist prepare_classifier_params() and use
    classifier_i3d_apply() instead (parameter prep then runs once per model)."""
    w_mat, bias_col, num_classes = prepare_classifier_params(
        conv_weight, conv_bias, compute_dtype=compute_dtype, class_pad=class_pad)
    return classifier_i3d_apply(x, w_mat, bias_col, num_classes, out_dtype=out_dtype)


if __name__ == "__main__":
    def _reference(x, conv_w, conv_b):
        o, c = conv_w.shape[0], conv_w.shape[1]
        y = jnp.einsum("ncthw,oc->nothw", x, conv_w.reshape(o, c),
                       preferred_element_type=jnp.float32)
        y = y + conv_b.reshape(1, o, 1, 1, 1)
        return _torch_squeeze(_torch_squeeze(y, 3), 3)

    key = jax.random.PRNGKey(0)
    keys = jax.random.split(key, 9)

    # Case 1: canonical i3d head (H == W == 1), hoisted weight prep, bf16
    # compute + bf16 writeback (defaults) -> logits (N, num_classes, T).
    n, c_in, t, h, w = 2, 32, 8, 1, 1
    num_classes = 16
    x = jax.random.normal(keys[0], (n, c_in, t, h, w), dtype=jnp.float32)
    conv_w = jax.random.normal(keys[1], (num_classes, c_in, 1, 1, 1), jnp.float32) * 0.05
    conv_b = jax.random.normal(keys[2], (num_classes,), jnp.float32) * 0.01

    w_mat, bias_col, nc = prepare_classifier_params(conv_w, conv_b)   # once per model
    apply_fn = jax.jit(classifier_i3d_apply, static_argnames=("num_classes", "out_dtype"))
    logits = jax.block_until_ready(apply_fn(x, w_mat, bias_col, num_classes=nc))
    assert logits.shape == (n, num_classes, t), logits.shape
    ref = _reference(x, conv_w, conv_b)
    err = float(jnp.max(jnp.abs(logits.astype(jnp.float32) - ref)))
    assert jnp.allclose(logits.astype(jnp.float32), ref, atol=3e-2, rtol=3e-2), err

    fwd = jax.jit(classifier_i3d_forward,
                  static_argnames=("compute_dtype", "out_dtype", "class_pad"))

    # Case 2: H, W > 1, num_classes > 128 with 128-class padding so the class
    # axis splits across both v7x TensorCores; f32 compute / f32 output
    # (bit-closer torch parity path).  Output stays 5-D (no size-1 dims).
    n2, c2, t2, h2, w2, o2 = 2, 32, 4, 2, 2, 200
    x2 = jax.random.normal(keys[3], (n2, c2, t2, h2, w2), dtype=jnp.float32)
    conv_w2 = jax.random.normal(keys[4], (o2, c2, 1, 1, 1), jnp.float32) * 0.05
    conv_b2 = jax.random.normal(keys[5], (o2,), jnp.float32) * 0.01
    out2 = jax.block_until_ready(
        fwd(x2, conv_w2, conv_b2, compute_dtype=jnp.float32,
            out_dtype=jnp.float32, class_pad=128))
    assert out2.shape == (n2, o2, t2, h2, w2), out2.shape
    ref2 = _reference(x2, conv_w2, conv_b2)
    err2 = float(jnp.max(jnp.abs(out2 - ref2)))
    assert jnp.allclose(out2, ref2, atol=2e-2, rtol=2e-2), err2

    # Case 3: larger fused T*H*W so the position axis is tiled into lane-dense
    # 512-wide blocks (multiple grid steps per batch element), bf16 defaults.
    n3, c3, t3, h3, w3, o3 = 2, 32, 8, 8, 16, 16
    x_l = jax.random.normal(keys[6], (n3, c3, t3, h3, w3), dtype=jnp.float32)
    conv_w_l = jax.random.normal(keys[7], (o3, c3, 1, 1, 1), jnp.float32) * 0.05
    conv_b_l = jax.random.normal(keys[8], (o3,), jnp.float32) * 0.01
    out_l = jax.block_until_ready(fwd(x_l, conv_w_l, conv_b_l))
    assert out_l.shape == (n3, o3, t3, h3, w3), out_l.shape
    ref_l = _reference(x_l, conv_w_l, conv_b_l)
    err_l = float(jnp.max(jnp.abs(out_l.astype(jnp.float32) - ref_l)))
    assert jnp.allclose(out_l.astype(jnp.float32), ref_l, atol=3e-2, rtol=3e-2), err_l

    print("KERNEL_OK")
</pallas_src>

<mosaic_0001>
module attributes {stable_mosaic.version = 11 : i64} {
  func.func @_conv1x1_bias_kernel(%arg0: i32, %arg1: i32, %arg2: i32, %arg3: memref<1x32x8xf32, #tpu.memory_space<vmem>>, %arg4: memref<16x32xbf16, #tpu.memory_space<vmem>>, %arg5: memref<16x1xf32, #tpu.memory_space<vmem>>, %arg6: memref<1x16x8xbf16, #tpu.memory_space<vmem>>) attributes {dimension_semantics = [#tpu.dimension_semantics<parallel>, #tpu.dimension_semantics<parallel>, #tpu.dimension_semantics<parallel>], iteration_bounds = array<i64: 2, 1, 1>, scalar_prefetch = 0 : i64, scratch_operands = 0 : i64, tpu.core_type = #tpu.core_type<tc>, window_params = [{transform_indices = @transform_0, window_bounds = array<i64: 1, 32, 8>}, {transform_indices = @transform_1, window_bounds = array<i64: 16, 32>}, {transform_indices = @transform_2, window_bounds = array<i64: 16, 1>}, {transform_indices = @transform_3, window_bounds = array<i64: 1, 16, 8>}]} {
    %c0 = arith.constant 0 : index
    %c0_0 = arith.constant 0 : index
    %c0_1 = arith.constant 0 : index
    %0 = vector.load %arg3[%c0, %c0_0, %c0_1] : memref<1x32x8xf32, #tpu.memory_space<vmem>>, vector<1x32x8xf32>
    %1 = vector.shape_cast %0 : vector<1x32x8xf32> to vector<32x8xf32>
    %2 = arith.truncf %1 : vector<32x8xf32> to vector<32x8xbf16>
    %c0_2 = arith.constant 0 : index
    %c0_3 = arith.constant 0 : index
    %3 = vector.load %arg4[%c0_2, %c0_3] : memref<16x32xbf16, #tpu.memory_space<vmem>>, vector<16x32xbf16>
    %cst = arith.constant dense<0.000000e+00> : vector<16x8xf32>
    %4 = tpu.matmul %3, %2, %cst {dimension_numbers = #tpu.dot_dimension_numbers<[1], [0], [0], [1], [0, 0, 1, 1], [], []>} : vector<16x32xbf16>, vector<32x8xbf16>, vector<16x8xf32> -> vector<16x8xf32>
    %c0_4 = arith.constant 0 : index
    %c0_5 = arith.constant 0 : index
    %5 = vector.load %arg5[%c0_4, %c0_5] : memref<16x1xf32, #tpu.memory_space<vmem>>, vector<16x1xf32>
    %6 = vector.broadcast %5 : vector<16x1xf32> to vector<16x8xf32>
    %7 = arith.addf %4, %6 : vector<16x8xf32>
    %8 = arith.truncf %7 : vector<16x8xf32> to vector<16x8xbf16>
    %c0_6 = arith.constant 0 : index
    %c0_7 = arith.constant 0 : index
    %c0_8 = arith.constant 0 : index
    %9 = vector.load %arg6[%c0_6, %c0_7, %c0_8] : memref<1x16x8xbf16, #tpu.memory_space<vmem>>, vector<1x16x8xbf16>
    %10 = vector.shape_cast %9 : vector<1x16x8xbf16> to vector<16x8xbf16>
    %11 = vector.shape_cast %8 : vector<16x8xbf16> to vector<1x16x8xbf16>
    tpu.vector_store %arg6[%c0_6, %c0_7, %c0_8], %11 {strides = array<i32>} : memref<1x16x8xbf16, #tpu.memory_space<vmem>>, vector<1x16x8xbf16>,
    return
  }
  func.func @transform_0(%arg0: i32, %arg1: i32, %arg2: i32) -> (i32, i32, i32) {
    %c0_i32 = arith.constant 0 : i32
    %c0_i32_0 = arith.constant 0 : i32
    return %arg0, %c0_i32, %arg1 : i32, i32, i32
  }
  func.func @transform_1(%arg0: i32, %arg1: i32, %arg2: i32) -> (i32, i32) {
    %c0_i32 = arith.constant 0 : i32
    %c0_i32_0 = arith.constant 0 : i32
    return %arg2, %c0_i32 : i32, i32
  }
  func.func @transform_2(%arg0: i32, %arg1: i32, %arg2: i32) -> (i32, i32) {
    %c0_i32 = arith.constant 0 : i32
    %c0_i32_0 = arith.constant 0 : i32
    return %arg2, %c0_i32 : i32, i32
  }
  func.func @transform_3(%arg0: i32, %arg1: i32, %arg2: i32) -> (i32, i32, i32) {
    %c0_i32 = arith.constant 0 : i32
    return %arg0, %arg2, %arg1 : i32, i32, i32
  }
}

</mosaic_0001>

<llo_original>
// kernel: classifier_i3d_apply.1
$region0: #{classifier_i3d_apply.1}
  #allocation0 [shape = 'u32[]', space=smem, size = 0x4, offset = 0x4, fixed_abs, tag = 'smem constant byte address 0x4 - core index']
  #allocation1 [shape = 'u32[72,128]{1,0:T(1,128)}', space=vmem, size = 0x9000, scoped, tag = 'internal scratch']
  %s0 = inlined_call_operand.vmem [shape: f32[2,32,8], index: 0, kind: input, shape index: {}]
  %s1 = inlined_call_operand.vmem [shape: bf16[16,32], index: 1, kind: input, shape index: {}]
  %s2 = inlined_call_operand.vmem [shape: f32[16,1], index: 2, kind: input, shape index: {}]
  %s3 = inlined_call_operand.vmem [shape: bf16[2,16,8], index: 3, kind: output, shape index: {}]
  %s4 = sld [smem:[#allocation0]]
  $region45: #{classifier_i3d_apply.1} parent=0
    _
  %s6 = ssub.s32 1, %s4
  %s7 = scalar_select 0, %s6, %s4
  loop: start=0, step=1, limit=4
  $region2: #{classifier_i3d_apply.1} parent=0 // loop_pre_header
    _
  $region3: #{classifier_i3d_apply.1} parent=0 // loop_header
    %s9 = sphi 0, %s13
    %p10 = scmp.ge.s32.totalorder %s9, 4
    %s16 = sphi 0, %s35
    %s17 = sphi 0, %s31
    %s18 = sphi 0, %s27
    %s19 = sphi 0, %s16
    %s20 = sphi 0, %s17
    %s21 = sphi 0, %s18
    %s22 = sphi 0, %s19
    %s23 = sphi 0, %s20
    %s24 = sphi 0, %s21
    %s40 = sphi 0, %s42
    %s43 = sphi 0, %s40
    %s44 = sphi 0, %s43
    %s60 = sphi 0, %s44
    %s66 = sphi 0, %s68
    %s69 = sphi 0, %s66
    %s70 = sphi 0, %s69
    %s86 = sphi 0, %s70
    %s92 = sphi 0, %s94
    %s95 = sphi 0, %s92
    %s96 = sphi 0, %s95
    %s112 = sphi 0, %s96
    %s122 = sphi 0, %s124
    %s125 = sphi 0, %s122
    %s126 = sphi 0, %s125
    %s142 = sphi 0, %s126
  $region4: #{classifier_i3d_apply.1} parent=0 // loop_header_branch
    %12 = sbr.rel (%p10) target = $region8
  $region5: #{classifier_i3d_apply.1} parent=0 // loop_body
    %s14 = ssub.s32 %s9, 1
    %s15 = ssub.s32 %s9, 2
    %s25 = sadd.s32 1, %s18
    %p26 = scmp.ge.s32.totalorder %s25, 1
    %s27 = scalar_select %p26, 0, %s25
    %s28 = sadd.s32 1, %s17
    %s29 = scalar_select %p26, %s28, %s17
    %p30 = scmp.ge.s32.totalorder %s29, 1
    %s31 = scalar_select %p30, 0, %s29
    %s32 = sadd.s32 1, %s16
    %s33 = scalar_select %p30, %s32, %s16
    %p34 = scmp.ge.s32.totalorder %s33, 2
    %s35 = scalar_select %p34, 0, %s33
    %s36 = ssub.s32 %s16, %s35
    %s37 = ssub.s32 %s17, %s31
    %s38 = sor.u32 %s36, %s37
    %p39 = scmp.eq.s32.totalorder %s38, 0
    %s41 = sadd.s32 %s40, 1
    %s42 = scalar_select %p39, %s40, %s41
    %p45 = pneg %p39
    %p46 = scmp.eq.s32.totalorder %s9, 1
    %p47 = por %p45, %p46
    %p48 = scmp.ne.s32.totalorder %s40, %s43
    %p49 = scmp.eq.s32.totalorder %s9, 0
    %p50 = por %p48, %p49
    %p51 = scmp.ne.s32.totalorder %s40, %s43
    %p52 = scmp.eq.s32.totalorder %s14, 1
    %p53 = por %p51, %p52
    %p54 = scmp.ne.s32.totalorder %s43, %s44
    %p55 = scmp.eq.s32.totalorder %s14, 0
    %p56 = por %p54, %p55
    %p57 = scmp.ne.s32.totalorder %s43, %s44
    %p58 = scmp.eq.s32.totalorder %s15, 1
    %p59 = por %p57, %p58
    %p61 = scmp.ne.s32.totalorder %s44, %s60
    %p62 = scmp.eq.s32.totalorder %s15, 0
    %p63 = por %p61, %p62
    %s64 = ssub.s32 %s18, %s27
    %p65 = scmp.eq.s32.totalorder %s64, 0
    %s67 = sadd.s32 %s66, 1
    %s68 = scalar_select %p65, %s66, %s67
    %p71 = pneg %p65
    %p72 = scmp.eq.s32.totalorder %s9, 1
    %p73 = por %p71, %p72
    %p74 = scmp.ne.s32.totalorder %s66, %s69
    %p75 = scmp.eq.s32.totalorder %s9, 0
    %p76 = por %p74, %p75
    %p77 = scmp.ne.s32.totalorder %s66, %s69
    %p78 = scmp.eq.s32.totalorder %s14, 1
    %p79 = por %p77, %p78
    %p80 = scmp.ne.s32.totalorder %s69, %s70
    %p81 = scmp.eq.s32.totalorder %s14, 0
    %p82 = por %p80, %p81
    %p83 = scmp.ne.s32.totalorder %s69, %s70
    %p84 = scmp.eq.s32.totalorder %s15, 1
    %p85 = por %p83, %p84
    %p87 = scmp.ne.s32.totalorder %s70, %s86
    %p88 = scmp.eq.s32.totalorder %s15, 0
    %p89 = por %p87, %p88
    %s90 = ssub.s32 %s18, %s27
    %p91 = scmp.eq.s32.totalorder %s90, 0
    %s93 = sadd.s32 %s92, 1
    %s94 = scalar_select %p91, %s92, %s93
    %p97 = pneg %p91
    %p98 = scmp.eq.s32.totalorder %s9, 1
    %p99 = por %p97, %p98
    %p100 = scmp.ne.s32.totalorder %s92, %s95
    %p101 = scmp.eq.s32.totalorder %s9, 0
    %p102 = por %p100, %p101
    %p103 = scmp.ne.s32.totalorder %s92, %s95
    %p104 = scmp.eq.s32.totalorder %s14, 1
    %p105 = por %p103, %p104
    %p106 = scmp.ne.s32.totalorder %s95, %s96
    %p107 = scmp.eq.s32.totalorder %s14, 0
    %p108 = por %p106, %p107
    %p109 = scmp.ne.s32.totalorder %s95, %s96
    %p110 = scmp.eq.s32.totalorder %s15, 1
    %p111 = por %p109, %p110
    %p113 = scmp.ne.s32.totalorder %s96, %s112
    %p114 = scmp.eq.s32.totalorder %s15, 0
    %p115 = por %p113, %p114
    %s116 = ssub.s32 %s16, %s35
    %s117 = ssub.s32 %s18, %s27
    %s118 = sor.u32 %s116, %s117
    %s119 = ssub.s32 %s17, %s31
    %s120 = sor.u32 %s118, %s119
    %p121 = scmp.eq.s32.totalorder %s120, 0
    %s123 = sadd.s32 %s122, 1
    %s124 = scalar_select %p121, %s122, %s123
    %p127 = pneg %p121
    %p128 = scmp.eq.s32.totalorder %s9, 1
    %p129 = por %p127, %p128
    %p130 = scmp.ne.s32.totalorder %s122, %s125
    %p131 = scmp.eq.s32.totalorder %s9, 0
    %p132 = por %p130, %p131
    %p133 = scmp.ne.s32.totalorder %s122, %s125
    %p134 = scmp.eq.s32.totalorder %s14, 1
    %p135 = por %p133, %p134
    %p136 = scmp.ne.s32.totalorder %s125, %s126
    %p137 = scmp.eq.s32.totalorder %s14, 0
    %p138 = por %p136, %p137
    %p139 = scmp.ne.s32.totalorder %s125, %s126
    %p140 = scmp.eq.s32.totalorder %s15, 1
    %p141 = por %p139, %p140
    %p143 = scmp.ne.s32.totalorder %s126, %s142
    %p144 = scmp.eq.s32.totalorder %s15, 0
    %p145 = por %p143, %p144
    %p146 = scmp.le.s32.totalorder 1, %s9
    %p147 = scmp.lt.s32.totalorder %s9, 3
    %p148 = pnand %p146, %p147
    %p149 = pneg %p148
    // Predicated region
    $region9: #{classifier_i3d_apply.1} parent=5 // pred_check
      _
    $region10: #{classifier_i3d_apply.1} parent=5 // pred_check_branch
      %151 = sbr.rel (%p148) target = $region12
    $region11: #{classifier_i3d_apply.1} parent=5 // pred_region
      %s152 = ssub.s32 %s9, 1
      // Predicated region
      $region13: #{classifier_i3d_apply.1} parent=11 // pred_check
        %p153 = pneg %p82
      $region14: #{classifier_i3d_apply.1} parent=11 // pred_check_branch
        %155 = sbr.rel (%p153) target = $region16
      $region15: #{classifier_i3d_apply.1} parent=11 // pred_region
        %s156 = smul.u32 2, %s21
        %p157 = scmp.lt.s32.totalorder %s156, 1
        %s158 = scalar_select %p157, %s156, 1
        %s159 = smul.addr %s158, 4
        %s160 = scalar_lea.vmem %s1, %s159
        %s161 = smul.u32 2, %s21
      $region16: #{classifier_i3d_apply.1} parent=11 // pred_fallthru
        _
      // Predicated region
      $region17: #{classifier_i3d_apply.1} parent=11 // pred_check
        %p162 = pneg %p108
      $region18: #{classifier_i3d_apply.1} parent=11 // pred_check_branch
        %164 = sbr.rel (%p162) target = $region20
      $region19: #{classifier_i3d_apply.1} parent=11 // pred_region
        %s165 = smul.u32 2, %s21
        %p166 = scmp.lt.s32.totalorder %s165, 1
        %s167 = scalar_select %p166, %s165, 1
        %s168 = smul.addr %s167, 8
        %s169 = scalar_lea.vmem %s2, %s168
        %s170 = smul.u32 2, %s21
      $region20: #{classifier_i3d_apply.1} parent=11 // pred_fallthru
        _
    $region12: #{classifier_i3d_apply.1} parent=5 // pred_fallthru
      _
    %p171 = scmp.lt.s32.totalorder %s9, 2
    // Predicated region
    $region21: #{classifier_i3d_apply.1} parent=5 // pred_check
      %p172 = pneg %p171
    $region22: #{classifier_i3d_apply.1} parent=5 // pred_check_branch
      %174 = sbr.rel (%p172) target = $region24
    $region23: #{classifier_i3d_apply.1} parent=5 // pred_region
      // Predicated region
      $region25: #{classifier_i3d_apply.1} parent=23 // pred_check
        %p175 = pneg %p50
      $region26: #{classifier_i3d_apply.1} parent=23 // pred_check_branch
        %177 = sbr.rel (%p175) target = $region28
      $region27: #{classifier_i3d_apply.1} parent=23 // pred_region
        %p178 = scmp.lt.s32.totalorder %s16, 1
        %s179 = scalar_select %p178, %s16, 1
        %p180 = scmp.lt.s32.totalorder %s17, 0
        %s181 = scalar_select %p180, %s17, 0
        %s182 = smul.addr %s179, 4
        %s183 = sadd.s32 %s181, %s182
        %s184 = smul.addr %s183, 8
        %s185 = scalar_lea.vmem %s0, %s184
      $region28: #{classifier_i3d_apply.1} parent=23 // pred_fallthru
        _
    $region24: #{classifier_i3d_apply.1} parent=5 // pred_fallthru
      _
    %p186 = scmp.le.s32.totalorder 1, %s9
    %p187 = scmp.lt.s32.totalorder %s9, 3
    %p188 = pnand %p186, %p187
    %p189 = pneg %p188
    // Predicated region
    $region29: #{classifier_i3d_apply.1} parent=5 // pred_check
      _
    $region30: #{classifier_i3d_apply.1} parent=5 // pred_check_branch
      %191 = sbr.rel (%p188) target = $region32
    $region31: #{classifier_i3d_apply.1} parent=5 // pred_region
      %s192 = ssub.s32 %s9, 1
      %p193 = scmp.lt.s32.totalorder %s19, 1
      %s194 = scalar_select %p193, %s19, 1
      %p195 = scmp.lt.s32.totalorder %s20, 0
      %s196 = scalar_select %p195, %s20, 0
      %s197 = smul.addr %s194, 4
      %s198 = sadd.s32 %s196, %s197
      %s199 = smul.addr %s198, 8
      %s200 = scalar_lea.vmem %s0, %s199
      %p201 = pneg %p56
      %p202 = pneg %p53
      %s203 = smul.u32 2, %s21
      %p204 = scmp.lt.s32.totalorder %s203, 1
      %s205 = scalar_select %p204, %s203, 1
      %s206 = smul.addr %s205, 4
      %s207 = scalar_lea.vmem %s1, %s206
      %p208 = pneg %p82
      %p209 = pneg %p79
      %s210 = smul.u32 2, %s21
      %p211 = scmp.lt.s32.totalorder %s210, 1
      %s212 = scalar_select %p211, %s210, 1
      %s213 = smul.addr %s212, 8
      %s214 = scalar_lea.vmem %s2, %s213
      %p215 = pneg %p108
      %p216 = pneg %p105
      %p217 = pneg %p138
      %p218 = pneg %p135
      %s219 = smul.u32 2, %s21
      %p220 = scmp.lt.s32.totalorder %s19, 1
      %s221 = scalar_select %p220, %s19, 1
      %p222 = scmp.lt.s32.totalorder %s219, 1
      %s223 = scalar_select %p222, %s219, 1
      %p224 = scmp.lt.s32.totalorder %s20, 0
      %s225 = scalar_select %p224, %s20, 0
      %s226 = sadd.s32 %s225, %s223
      %s227 = smul.addr %s221, 2
      %s228 = sadd.s32 %s226, %s227
      %s229 = smul.addr %s228, 4
      %s230 = scalar_lea.vmem %s3, %s229
      %p231 = scmp.lt.s32.totalorder %s19, 1
      %s232 = scalar_select %p231, %s19, 1
      %p233 = scmp.lt.s32.totalorder %s20, 0
      %s234 = scalar_select %p233, %s20, 0
      %s235 = smul.addr %s232, 4
      %s236 = sadd.s32 %s234, %s235
      %s237 = smul.addr %s236, 8
      %s238 = scalar_lea.vmem %s0, %s237
      %s239 = smul.u32 2, %s21
      %p240 = scmp.lt.s32.totalorder %s239, 1
      %s241 = scalar_select %p240, %s239, 1
      %s242 = smul.addr %s241, 4
      %s243 = scalar_lea.vmem %s1, %s242
      %s244 = smul.u32 2, %s21
      %s245 = smul.u32 2, %s21
      %p246 = scmp.lt.s32.totalorder %s245, 1
      %s247 = scalar_select %p246, %s245, 1
      %s248 = smul.addr %s247, 8
      %s249 = scalar_lea.vmem %s2, %s248
      %s250 = smul.u32 2, %s21
      %s251 = smul.u32 2, %s21
      %p252 = scmp.lt.s32.totalorder %s19, 1
      %s253 = scalar_select %p252, %s19, 1
      %p254 = scmp.lt.s32.totalorder %s251, 1
      %s255 = scalar_select %p254, %s251, 1
      %p256 = scmp.lt.s32.totalorder %s20, 0
      %s257 = scalar_select %p256, %s20, 0
      %s258 = sadd.s32 %s257, %s255
      %s259 = smul.addr %s253, 2
      %s260 = sadd.s32 %s258, %s259
      %s261 = smul.addr %s260, 4
      %s262 = scalar_lea.vmem %s3, %s261
      %s263 = smul.u32 2, %s21
      %v265 = vld [vmem:[%s238] sm:$0xff]
      %v266 = vld [vmem:[%s238 + $0x8] sm:$0xff]
      %v267 = vld [vmem:[%s238 + $0x10] sm:$0xff]
      %v268 = vld [vmem:[%s238 + $0x18] sm:$0xff]
      %v269 = vpack.c.bf16 %v266, %v265
      %v270 = vpack.c.bf16 %v268, %v267
      %v271 = vld [vmem:[%s243] sm:$0xf]
      %v272 = vld [vmem:[%s243 + $0x4] sm:$0xf]
      %v273 = vld [vmem:[%s249] sm:$0xff]
      %v274 = vld [vmem:[%s249 + $0x8] sm:$0xff]
      %276 = vset.pattern.permute.xlu0 0
      %277 = vperm.xlu0 %276, %v273
      %v278 = vpop.permute.xlu0 %277
      %281 = vset.pattern.permute.xlu0 0
      %282 = vperm.xlu0 %281, %v274
      %v283 = vpop.permute.xlu0 %282
      %v287 = vunpack.c.l.b16 %v271
      %v288 = vunpack.c.l.b16 %v272
      %v289 = vpack.c.b16 %v288, %v287
      %vm290 = vcmask 261120
      %v292 = vsel %vm290, %v289, 0
      %294 = vmatpush.bf16.msra.mxu0 0
      %295 = vmatpush.bf16.msra.mxu0 0
      %296 = vmatpush.bf16.msra.mxu0 0
      %297 = vmatpush.bf16.msra.mxu0 0
      %298 = vmatpush.bf16.msra.mxu0 0
      %299 = vmatpush.bf16.msra.mxu0 0
      %300 = vmatpush.bf16.msra.mxu0 %v270
      %301 = vmatpush.bf16.msra.mxu0 %v269
      %302 = vmatmul.bf16.gmra.mxu0 %v292
      %v303 = vpop.f32.mrf.mxu0
      %v304 = vadd.f32 %v278, %v303
      %v305 = vpop.f32.mrf.mxu0
      %v306 = vadd.f32 %v283, %v305
      %307 = vdwg.mxu0
      %v308 = vpack.c.bf16 %v304, %v304
      %v309 = vpack.c.bf16 %v306, %v306
      %vm310 = vcmask 60416
      %311 = vst.msk [vmem:[%s262] sm:$0xf] %vm310, %v308
      %312 = vst.msk [vmem:[%s262 + $0x4] sm:$0xf] %vm310, %v309
      %s313 = smul.u32 2, %s21
      %p314 = scmp.lt.s32.totalorder %s19, 1
      %s315 = scalar_select %p314, %s19, 1
      %p316 = scmp.lt.s32.totalorder %s313, 1
      %s317 = scalar_select %p316, %s313, 1
      %p318 = scmp.lt.s32.totalorder %s20, 0
      %s319 = scalar_select %p318, %s20, 0
      %s320 = sadd.s32 %s319, %s317
      %s321 = smul.addr %s315, 2
      %s322 = sadd.s32 %s320, %s321
      %s323 = smul.addr %s322, 4
      %s324 = scalar_lea.vmem %s3, %s323
      // Predicated region
      $region33: #{classifier_i3d_apply.1} parent=31 // pred_check
        %p325 = pneg %p135
      $region34: #{classifier_i3d_apply.1} parent=31 // pred_check_branch
        %327 = sbr.rel (%p325) target = $region36
      $region35: #{classifier_i3d_apply.1} parent=31 // pred_region
        %s328 = smul.u32 2, %s21
      $region36: #{classifier_i3d_apply.1} parent=31 // pred_fallthru
        _
    $region32: #{classifier_i3d_apply.1} parent=5 // pred_fallthru
      _
    %p329 = scmp.le.s32.totalorder 2, %s9
    // Predicated region
    $region37: #{classifier_i3d_apply.1} parent=5 // pred_check
      %p330 = pneg %p329
    $region38: #{classifier_i3d_apply.1} parent=5 // pred_check_branch
      %332 = sbr.rel (%p330) target = $region40
    $region39: #{classifier_i3d_apply.1} parent=5 // pred_region
      %s333 = ssub.s32 %s9, 2
      // Predicated region
      $region41: #{classifier_i3d_apply.1} parent=39 // pred_check
        %p334 = pneg %p141
      $region42: #{classifier_i3d_apply.1} parent=39 // pred_check_branch
        %336 = sbr.rel (%p334) target = $region44
      $region43: #{classifier_i3d_apply.1} parent=39 // pred_region
        %s337 = smul.u32 2, %s24
        %p338 = scmp.lt.s32.totalorder %s22, 1
        %s339 = scalar_select %p338, %s22, 1
        %p340 = scmp.lt.s32.totalorder %s337, 1
        %s341 = scalar_select %p340, %s337, 1
        %p342 = scmp.lt.s32.totalorder %s23, 0
        %s343 = scalar_select %p342, %s23, 0
        %s344 = sadd.s32 %s343, %s341
        %s345 = smul.addr %s339, 2
        %s346 = sadd.s32 %s344, %s345
        %s347 = smul.addr %s346, 4
        %s348 = scalar_lea.vmem %s3, %s347
      $region44: #{classifier_i3d_apply.1} parent=39 // pred_fallthru
        _
    $region40: #{classifier_i3d_apply.1} parent=5 // pred_fallthru
      _
  $region6: #{classifier_i3d_apply.1} parent=0 // loop_footer
    %s13 = sadd.s32 1, %s9
  $region7: #{classifier_i3d_apply.1} parent=0 // loop_footer_branch
    %8 = sbr.rel target = $region3
  $region8: #{classifier_i3d_apply.1} parent=0 // loop_exit
    _

</llo_original>
